<compile_context>
chip_gen: v7x
topology: tpu7x:2x2x1
jax: 0.10.0
libtpu: 0.0.40
codegen_flags: <defaults>
</compile_context>

<pallas_src>
import functools

import jax
import jax.numpy as jnp
import numpy as np
from jax.experimental import pallas as pl
from jax.experimental.pallas import tpu as pltpu

# ----------------------------- small test shapes ----------------------------
BATCH = 2          # batch
N_VIEW = 2         # n_view
BACKBONE_D = 512   # backboneD (resnet18 variant)
HW = 16            # flattened spatial size of the backbone feature map (4x4)
OUTPUT_D = 512     # output_d (module default)


def _fuse_project_kernel(feat_ref, w_ref, b_ref, o_ref, *, fuse):
    """One grid step == one batch element.

    feat_ref : (1, N_VIEW, HW, C)  backbone features, channels last
    w_ref    : (C, OUTPUT_D)       Linear weight, pre-transposed (no .T here)
    b_ref    : (1, OUTPUT_D)       Linear bias
    o_ref    : (1, HW, OUTPUT_D)
    """
    f = feat_ref[0].astype(jnp.float32)            # (V, HW, C)
    if fuse == "mean":
        x = jnp.mean(f, axis=0)                    # (HW, C)
    else:  # "max"
        x = jnp.max(f, axis=0)
    y = jnp.dot(x, w_ref[...], preferred_element_type=jnp.float32)   # (HW, Dout)
    y = y + b_ref[...]                             # bias (1, Dout) broadcasts
    o_ref[0] = y.astype(o_ref.dtype)


def image_encoder_head(features, w_pt, bias, fuse="mean"):
    """Pallas equivalent of ImageEncoder.forward AFTER the conv backbone.

    features: (batch, n_view, backboneD, H*W) -- as produced by
              `feature.view(batch, n_view, self.backboneD, -1)` in PyTorch.
    w_pt:     (output_d, backboneD)  -- nn.Linear weight (PyTorch convention).
    bias:     (1, output_d)          -- nn.Linear bias.
    returns:  (batch, H*W, output_d)
    """
    # TODO(synk): fuse='cat' (flatten views into the sequence dim) is not wired up.
    assert fuse in ("mean", "max"), fuse
    b, v, c, hw = features.shape
    dout, cin = w_pt.shape
    assert cin == c

    # Wrapper-side layout plumbing (free): channels-last so C sits on the lane
    # axis (512 = 4x128, unmasked vld/vst) and weight pre-transposed so the
    # in-kernel dot needs no transpose.
    feat = jnp.transpose(features, (0, 1, 3, 2))   # (B, V, HW, C)
    w = jnp.transpose(w_pt, (1, 0))                # (C, Dout)

    kernel = functools.partial(_fuse_project_kernel, fuse=fuse)
    return pl.pallas_call(
        kernel,
        out_shape=jax.ShapeDtypeStruct((b, hw, dout), features.dtype),
        grid_spec=pltpu.PrefetchScalarGridSpec(
            num_scalar_prefetch=0,
            grid=(b,),
            in_specs=[
                pl.BlockSpec((1, v, hw, c), lambda i: (i, 0, 0, 0)),  # features
                pl.BlockSpec((c, dout), lambda i: (0, 0)),            # weight
                pl.BlockSpec((1, dout), lambda i: (0, 0)),            # bias
            ],
            out_specs=pl.BlockSpec((1, hw, dout), lambda i: (i, 0, 0)),
        ),
        compiler_params=pltpu.CompilerParams(
            dimension_semantics=("parallel",)),      # v7x: one batch per TC
    )(feat, w, bias)


# --------------------------- reference (pure JAX) ---------------------------
def _ref_forward(features, w_pt, bias, fuse="mean"):
    """Mirrors the PyTorch code path from the backbone features onward."""
    if fuse == "mean":
        f = jnp.mean(features, axis=1)             # (B, C, HW)
    else:
        f = jnp.max(features, axis=1)
    x = jnp.transpose(f, (0, 2, 1))                # (B, HW, C)
    return x @ w_pt.T + bias                       # (B, HW, Dout)


if __name__ == "__main__":
    key = jax.random.PRNGKey(0)
    k_feat, k_w, k_b = jax.random.split(key, 3)

    # TODO(synk): the pretrained ResNet/DenseNet conv backbone (self.model) is
    # not translated to Pallas; we start from its output feature maps.
    # Conceptually: images [2, 2, 3, 128, 128] -> resnet18 (/32) -> [4, 512, 4, 4]
    # -> view(batch, n_view, backboneD, -1) = (2, 2, 512, 16).
    features = jax.random.normal(
        k_feat, (BATCH, N_VIEW, BACKBONE_D, HW), dtype=jnp.float32)
    w_pt = jax.random.normal(
        k_w, (OUTPUT_D, BACKBONE_D), dtype=jnp.float32) * 0.02
    bias = jax.random.normal(k_b, (1, OUTPUT_D), dtype=jnp.float32) * 0.02

    out = image_encoder_head(features, w_pt, bias, fuse="mean")
    out = jax.block_until_ready(out)

    ref = _ref_forward(features, w_pt, bias, fuse="mean")
    assert out.shape == (BATCH, HW, OUTPUT_D)
    np.testing.assert_allclose(np.asarray(out), np.asarray(ref),
                               rtol=1e-2, atol=1e-2)
    print("KERNEL_OK")
</pallas_src>

<mosaic_0001>
module attributes {stable_mosaic.version = 11 : i64} {
  func.func @_fuse_project_kernel(%arg0: i32, %arg1: memref<1x2x16x512xf32, #tpu.memory_space<vmem>>, %arg2: memref<512x512xf32, #tpu.memory_space<vmem>>, %arg3: memref<1x512xf32, #tpu.memory_space<vmem>>, %arg4: memref<1x16x512xf32, #tpu.memory_space<vmem>>) attributes {dimension_semantics = [#tpu.dimension_semantics<parallel>], iteration_bounds = array<i64: 2>, scalar_prefetch = 0 : i64, scratch_operands = 0 : i64, tpu.core_type = #tpu.core_type<tc>, window_params = [{transform_indices = @transform_0, window_bounds = array<i64: 1, 2, 16, 512>}, {pipeline_mode = #tpu.pipeline_mode<synchronous>, transform_indices = @transform_1, window_bounds = array<i64: 512, 512>}, {pipeline_mode = #tpu.pipeline_mode<synchronous>, transform_indices = @transform_2, window_bounds = array<i64: 1, 512>}, {transform_indices = @transform_3, window_bounds = array<i64: 1, 16, 512>}]} {
    %c0 = arith.constant 0 : index
    %c0_0 = arith.constant 0 : index
    %c0_1 = arith.constant 0 : index
    %c0_2 = arith.constant 0 : index
    %0 = vector.load %arg1[%c0, %c0_0, %c0_1, %c0_2] : memref<1x2x16x512xf32, #tpu.memory_space<vmem>>, vector<1x2x16x512xf32>
    %1 = vector.shape_cast %0 : vector<1x2x16x512xf32> to vector<2x16x512xf32>
    %cst = arith.constant dense<0.000000e+00> : vector<16x512xf32>
    %2 = vector.multi_reduction <add>, %1, %cst [0] : vector<2x16x512xf32> to vector<16x512xf32>
    %cst_3 = arith.constant 2.000000e+00 : f32
    %3 = vector.broadcast %cst_3 : f32 to vector<16x512xf32>
    %4 = arith.divf %2, %3 : vector<16x512xf32>
    %c0_4 = arith.constant 0 : index
    %c0_5 = arith.constant 0 : index
    %5 = vector.load %arg2[%c0_4, %c0_5] : memref<512x512xf32, #tpu.memory_space<vmem>>, vector<512x512xf32>
    %cst_6 = arith.constant dense<0.000000e+00> : vector<16x512xf32>
    %6 = tpu.matmul %4, %5, %cst_6 {dimension_numbers = #tpu.dot_dimension_numbers<[1], [0], [0], [1], [0, 0, 1, 1], [], []>} : vector<16x512xf32>, vector<512x512xf32>, vector<16x512xf32> -> vector<16x512xf32>
    %c0_7 = arith.constant 0 : index
    %c0_8 = arith.constant 0 : index
    %7 = vector.load %arg3[%c0_7, %c0_8] : memref<1x512xf32, #tpu.memory_space<vmem>>, vector<1x512xf32>
    %8 = vector.broadcast %7 : vector<1x512xf32> to vector<16x512xf32>
    %9 = arith.addf %6, %8 : vector<16x512xf32>
    %c0_9 = arith.constant 0 : index
    %c0_10 = arith.constant 0 : index
    %c0_11 = arith.constant 0 : index
    %10 = vector.load %arg4[%c0_9, %c0_10, %c0_11] : memref<1x16x512xf32, #tpu.memory_space<vmem>>, vector<1x16x512xf32>
    %11 = vector.shape_cast %10 : vector<1x16x512xf32> to vector<16x512xf32>
    %12 = vector.shape_cast %9 : vector<16x512xf32> to vector<1x16x512xf32>
    tpu.vector_store %arg4[%c0_9, %c0_10, %c0_11], %12 {strides = array<i32>} : memref<1x16x512xf32, #tpu.memory_space<vmem>>, vector<1x16x512xf32>,
    return
  }
  func.func @transform_0(%arg0: i32) -> (i32, i32, i32, i32) {
    %c0_i32 = arith.constant 0 : i32
    %c0_i32_0 = arith.constant 0 : i32
    %c0_i32_1 = arith.constant 0 : i32
    %c0_i32_2 = arith.constant 0 : i32
    return %arg0, %c0_i32, %c0_i32_0, %c0_i32_1 : i32, i32, i32, i32
  }
  func.func @transform_1(%arg0: i32) -> (i32, i32) {
    %c0_i32 = arith.constant 0 : i32
    %c0_i32_0 = arith.constant 0 : i32
    %c0_i32_1 = arith.constant 0 : i32
    return %c0_i32, %c0_i32_0 : i32, i32
  }
  func.func @transform_2(%arg0: i32) -> (i32, i32) {
    %c0_i32 = arith.constant 0 : i32
    %c0_i32_0 = arith.constant 0 : i32
    %c0_i32_1 = arith.constant 0 : i32
    return %c0_i32, %c0_i32_0 : i32, i32
  }
  func.func @transform_3(%arg0: i32) -> (i32, i32, i32) {
    %c0_i32 = arith.constant 0 : i32
    %c0_i32_0 = arith.constant 0 : i32
    %c0_i32_1 = arith.constant 0 : i32
    return %arg0, %c0_i32, %c0_i32_0 : i32, i32, i32
  }
}

</mosaic_0001>

<llo_original>
// kernel: tpu_custom_call.1
$region0: #{tpu_custom_call.1}
  #allocation0 [shape = 'u32[]', space=smem, size = 0x4, offset = 0x4, fixed_abs, tag = 'smem constant byte address 0x4 - core index']
  #allocation1 [shape = 'u32[144,128]{1,0:T(1,128)}', space=vmem, size = 0x12000, scoped, tag = 'internal scratch']
  %s0 = inlined_call_operand.hbm [shape: f32[2,2,16,512], index: 0, kind: input, shape index: {}]
  %s1 = inlined_call_operand.hbm [shape: f32[512,512], index: 1, kind: input, shape index: {}]
  %s2 = inlined_call_operand.vmem [shape: f32[1,512], index: 2, kind: input, shape index: {}]
  %s3 = inlined_call_operand.hbm [shape: f32[2,16,512], index: 3, kind: output, shape index: {}]
  %s4 = sld [smem:[#allocation0]]
  $region53: #{tpu_custom_call.1} parent=0
    _
  %s6 = ssub.s32 1, %s4
  %s7 = scalar_select 0, %s6, %s4
  $region1: #{tpu_custom_call.1} parent=0
    #allocation2 [shape = 'u8[131072]{0}', space=vmem, size = 0x20000, scoped, tag = 'input window, operand 0']
    #allocation3 [shape = 's32[2]{0}', space=sflag, size = 0x8, scoped, tag = 'scoped memory for tpu_custom_call.1']
    #allocation4 [shape = 's32[2]{0}', space=sflag, size = 0x8, scoped, tag = 'scoped memory for tpu_custom_call.1']
    #allocation5 [shape = 'u8[1048576]{0}', space=vmem, size = 0x100000, scoped, tag = 'input window, operand 1, single buffered']
    #allocation6 [shape = 's32[1]{0}', space=sflag, size = 0x4, scoped, tag = 'scoped memory for tpu_custom_call.1']
    #allocation7 [shape = 'u8[65536]{0}', space=vmem, size = 0x10000, scoped, tag = 'output window, operand 0']
    %8 = vsyncpa [#allocation3], 0
    %s9 = scalar_lea.sflag [#allocation3], 1
    %10 = vsyncpa %s9, 0
    %11 = vsyncpa [#allocation6], 0
    %12 = vsyncpa [#allocation4], 0
    %s13 = scalar_lea.sflag [#allocation4], 1
    %14 = vsyncpa %s13, 0
    loop: start=0, step=1, limit=4
    $region2: #{tpu_custom_call.1} parent=1 // loop_pre_header
      _
    $region3: #{tpu_custom_call.1} parent=1 // loop_header
      %s16 = sphi 0, %s20
      %p17 = scmp.ge.s32.totalorder %s16, 4
      %s26 = sphi 0, %s28
      %s29 = sphi 0, %s26
      %s30 = sphi 0, %s29
      %s46 = sphi 0, %s30
      %s50 = sphi 0, %s50
      %s52 = sphi 0, %s50
      %s53 = sphi 0, %s52
      %s67 = sphi 0, %s53
      %s71 = sphi 0, %s71
      %s73 = sphi 0, %s71
      %s74 = sphi 0, %s73
      %s88 = sphi 0, %s74
      %s94 = sphi 0, %s96
      %s97 = sphi 0, %s94
      %s98 = sphi 0, %s97
      %s114 = sphi 0, %s98
    $region4: #{tpu_custom_call.1} parent=1 // loop_header_branch
      %19 = sbr.rel (%p17) target = $region8
    $region5: #{tpu_custom_call.1} parent=1 // loop_body
      %s21 = ssub.s32 %s16, 1
      %s22 = ssub.s32 %s16, 2
      %s23 = sadd.s32 %s16, 1
      %s24 = ssub.s32 %s16, %s23
      %p25 = scmp.eq.s32.totalorder %s24, 0
      %s27 = sadd.s32 %s26, 1
      %s28 = scalar_select %p25, %s26, %s27
      %p31 = pneg %p25
      %p32 = scmp.eq.s32.totalorder %s16, 1
      %p33 = por %p31, %p32
      %p34 = scmp.ne.s32.totalorder %s26, %s29
      %p35 = scmp.eq.s32.totalorder %s16, 0
      %p36 = por %p34, %p35
      %p37 = scmp.ne.s32.totalorder %s26, %s29
      %p38 = scmp.eq.s32.totalorder %s21, 1
      %p39 = por %p37, %p38
      %p40 = scmp.ne.s32.totalorder %s29, %s30
      %p41 = scmp.eq.s32.totalorder %s21, 0
      %p42 = por %p40, %p41
      %p43 = scmp.ne.s32.totalorder %s29, %s30
      %p44 = scmp.eq.s32.totalorder %s22, 1
      %p45 = por %p43, %p44
      %p47 = scmp.ne.s32.totalorder %s30, %s46
      %p48 = scmp.eq.s32.totalorder %s22, 0
      %p49 = por %p47, %p48
      %s51 = sadd.s32 %s50, 1
      %p54 = scmp.eq.s32.totalorder %s16, 1
      %p55 = scmp.ne.s32.totalorder %s50, %s52
      %p56 = scmp.eq.s32.totalorder %s16, 0
      %p57 = por %p55, %p56
      %p58 = scmp.ne.s32.totalorder %s50, %s52
      %p59 = scmp.eq.s32.totalorder %s21, 1
      %p60 = por %p58, %p59
      %p61 = scmp.ne.s32.totalorder %s52, %s53
      %p62 = scmp.eq.s32.totalorder %s21, 0
      %p63 = por %p61, %p62
      %p64 = scmp.ne.s32.totalorder %s52, %s53
      %p65 = scmp.eq.s32.totalorder %s22, 1
      %p66 = por %p64, %p65
      %p68 = scmp.ne.s32.totalorder %s53, %s67
      %p69 = scmp.eq.s32.totalorder %s22, 0
      %p70 = por %p68, %p69
      %s72 = sadd.s32 %s71, 1
      %p75 = scmp.eq.s32.totalorder %s16, 1
      %p76 = scmp.ne.s32.totalorder %s71, %s73
      %p77 = scmp.eq.s32.totalorder %s16, 0
      %p78 = por %p76, %p77
      %p79 = scmp.ne.s32.totalorder %s71, %s73
      %p80 = scmp.eq.s32.totalorder %s21, 1
      %p81 = por %p79, %p80
      %p82 = scmp.ne.s32.totalorder %s73, %s74
      %p83 = scmp.eq.s32.totalorder %s21, 0
      %p84 = por %p82, %p83
      %p85 = scmp.ne.s32.totalorder %s73, %s74
      %p86 = scmp.eq.s32.totalorder %s22, 1
      %p87 = por %p85, %p86
      %p89 = scmp.ne.s32.totalorder %s74, %s88
      %p90 = scmp.eq.s32.totalorder %s22, 0
      %p91 = por %p89, %p90
      %s92 = ssub.s32 %s16, %s23
      %p93 = scmp.eq.s32.totalorder %s92, 0
      %s95 = sadd.s32 %s94, 1
      %s96 = scalar_select %p93, %s94, %s95
      %p99 = pneg %p93
      %p100 = scmp.eq.s32.totalorder %s16, 1
      %p101 = por %p99, %p100
      %p102 = scmp.ne.s32.totalorder %s94, %s97
      %p103 = scmp.eq.s32.totalorder %s16, 0
      %p104 = por %p102, %p103
      %p105 = scmp.ne.s32.totalorder %s94, %s97
      %p106 = scmp.eq.s32.totalorder %s21, 1
      %p107 = por %p105, %p106
      %p108 = scmp.ne.s32.totalorder %s97, %s98
      %p109 = scmp.eq.s32.totalorder %s21, 0
      %p110 = por %p108, %p109
      %p111 = scmp.ne.s32.totalorder %s97, %s98
      %p112 = scmp.eq.s32.totalorder %s22, 1
      %p113 = por %p111, %p112
      %p115 = scmp.ne.s32.totalorder %s98, %s114
      %p116 = scmp.eq.s32.totalorder %s22, 0
      %p117 = por %p115, %p116
      %p118 = scmp.le.s32.totalorder 1, %s16
      %p119 = scmp.lt.s32.totalorder %s16, 3
      %p120 = pnand %p118, %p119
      %p121 = pneg %p120
      // Predicated region
      $region9: #{tpu_custom_call.1} parent=5 // pred_check
        _
      $region10: #{tpu_custom_call.1} parent=5 // pred_check_branch
        %123 = sbr.rel (%p120) target = $region12
      $region11: #{tpu_custom_call.1} parent=5 // pred_region
        %s124 = ssub.s32 %s16, 1
        // Predicated region
        $region13: #{tpu_custom_call.1} parent=11 // pred_check
          %p125 = pneg %p63
        $region14: #{tpu_custom_call.1} parent=11 // pred_check_branch
          %127 = sbr.rel (%p125) target = $region16
        $region15: #{tpu_custom_call.1} parent=11 // pred_region
          %s129 = ssub.s32 32768, 32768
          %130 = vsyncadd [#allocation6], %s129
          %s131 = sshll.u32 [#allocation5], 4
          %s132 = int_to_ptr.vmem [resolvable:$true] %s131
          %137 = dma.hbm_to_vmem [thread:$0]  %s1, 32768, %s132, [#allocation6], 512, 512, 32
        $region16: #{tpu_custom_call.1} parent=11 // pred_fallthru
          _
        // Predicated region
        $region17: #{tpu_custom_call.1} parent=11 // pred_check
          %p138 = pneg %p84
        $region18: #{tpu_custom_call.1} parent=11 // pred_check_branch
          %140 = sbr.rel (%p138) target = $region20
        $region19: #{tpu_custom_call.1} parent=11 // pred_region
          _
        $region20: #{tpu_custom_call.1} parent=11 // pred_fallthru
          _
      $region12: #{tpu_custom_call.1} parent=5 // pred_fallthru
        _
      %p141 = scmp.lt.s32.totalorder %s16, 2
      // Predicated region
      $region21: #{tpu_custom_call.1} parent=5 // pred_check
        %p142 = pneg %p141
      $region22: #{tpu_custom_call.1} parent=5 // pred_check_branch
        %144 = sbr.rel (%p142) target = $region24
      $region23: #{tpu_custom_call.1} parent=5 // pred_region
        // Predicated region
        $region25: #{tpu_custom_call.1} parent=23 // pred_check
          %p145 = pneg %p36
        $region26: #{tpu_custom_call.1} parent=23 // pred_check_branch
          %147 = sbr.rel (%p145) target = $region28
        $region27: #{tpu_custom_call.1} parent=23 // pred_region
          %s148 = sand.u32 %s26, 1
          %s149 = scalar_lea.sflag [#allocation3], %s148
          %s150 = sand.u32 %s26, 1
          %s151 = smul.addr %s150, 128
          %s152 = scalar_lea.vmem [#allocation2], %s151
          %s154 = ssub.s32 2048, 2048
          %155 = vsyncadd %s149, %s154
          %s156 = smul.addr %s16, 16
          %s157 = smul.addr %s156, 128
          %s158 = scalar_lea.hbm %s0, %s157
          %s159 = sshll.u32 %s152, 4
          %s160 = int_to_ptr.vmem [resolvable:$true] %s159
          %165 = dma.hbm_to_vmem [thread:$0]  %s158, 2048, %s160, %s149, 512, 512, 32
        $region28: #{tpu_custom_call.1} parent=23 // pred_fallthru
          _
      $region24: #{tpu_custom_call.1} parent=5 // pred_fallthru
        _
      %p166 = scmp.le.s32.totalorder 1, %s16
      %p167 = scmp.lt.s32.totalorder %s16, 3
      %p168 = pnand %p166, %p167
      %p169 = pneg %p168
      // Predicated region
      $region29: #{tpu_custom_call.1} parent=5 // pred_check
        _
      $region30: #{tpu_custom_call.1} parent=5 // pred_check_branch
        %171 = sbr.rel (%p168) target = $region32
      $region31: #{tpu_custom_call.1} parent=5 // pred_region
        %s172 = ssub.s32 %s16, 1
        %s173 = sand.u32 %s29, 1
        %s174 = scalar_lea.sflag [#allocation3], %s173
        %s175 = sand.u32 %s29, 1
        %s176 = smul.addr %s175, 128
        %s177 = scalar_lea.vmem [#allocation2], %s176
        // Predicated region
        $region33: #{tpu_custom_call.1} parent=31 // pred_check
          %p178 = pneg %p42
        $region34: #{tpu_custom_call.1} parent=31 // pred_check_branch
          %180 = sbr.rel (%p178) target = $region36
        $region35: #{tpu_custom_call.1} parent=31 // pred_region
          %181 = dma.done %s174, 2048
        $region36: #{tpu_custom_call.1} parent=31 // pred_fallthru
          _
        // Predicated region
        $region37: #{tpu_custom_call.1} parent=31 // pred_check
          %p182 = pneg %p63
        $region38: #{tpu_custom_call.1} parent=31 // pred_check_branch
          %184 = sbr.rel (%p182) target = $region40
        $region39: #{tpu_custom_call.1} parent=31 // pred_region
          %185 = dma.done [#allocation6], 32768
        $region40: #{tpu_custom_call.1} parent=31 // pred_fallthru
          _
        %s186 = sand.u32 %s29, 1
        %s187 = scalar_lea.sflag [#allocation3], %s186
        %s188 = sand.u32 %s29, 1
        %s189 = smul.addr %s188, 128
        %s190 = scalar_lea.vmem [#allocation2], %s189
        %p191 = pneg %p42
        %p192 = pneg %p39
        %p193 = pneg %p63
        %p194 = pneg %p60
        %p195 = pneg %p84
        %p196 = pneg %p81
        %p197 = pneg %p110
        %p198 = pneg %p107
        %s199 = sand.u32 %s97, 1
        %s200 = scalar_lea.sflag [#allocation4], %s199
        %s201 = sand.u32 %s97, 1
        %s202 = smul.addr %s201, 64
        %s203 = scalar_lea.vmem [#allocation7], %s202
        %v204 = vld [vmem:[%s177] sm:$0xff]
        %v205 = vld [vmem:[%s177 + $0x8] sm:$0xff]
        %v206 = vld [vmem:[%s177 + $0x10] sm:$0xff]
        %v207 = vld [vmem:[%s177 + $0x18] sm:$0xff]
        %v208 = vld [vmem:[%s177 + $0x20] sm:$0xff]
        %v209 = vld [vmem:[%s177 + $0x28] sm:$0xff]
        %v210 = vld [vmem:[%s177 + $0x30] sm:$0xff]
        %v211 = vld [vmem:[%s177 + $0x38] sm:$0xff]
        %v212 = vld [vmem:[%s177 + $0x40] sm:$0xff]
        %v213 = vld [vmem:[%s177 + $0x48] sm:$0xff]
        %v214 = vld [vmem:[%s177 + $0x50] sm:$0xff]
        %v215 = vld [vmem:[%s177 + $0x58] sm:$0xff]
        %v216 = vld [vmem:[%s177 + $0x60] sm:$0xff]
        %v217 = vld [vmem:[%s177 + $0x68] sm:$0xff]
        %v218 = vld [vmem:[%s177 + $0x70] sm:$0xff]
        %v219 = vld [vmem:[%s177 + $0x78] sm:$0xff]
        %v220 = vadd.f32 %v204, %v212
        %v221 = vadd.f32 %v205, %v213
        %v222 = vadd.f32 %v206, %v214
        %v223 = vadd.f32 %v207, %v215
        %v224 = vadd.f32 %v208, %v216
        %v225 = vadd.f32 %v209, %v217
        %v226 = vadd.f32 %v210, %v218
        %v227 = vadd.f32 %v211, %v219
        %v228 = vrcp.pop 2.0
        %v229 = vmul.f32 %v220, %v228
        %v230 = vmul.f32 %v221, %v228
        %v231 = vmul.f32 %v222, %v228
        %v232 = vmul.f32 %v223, %v228
        %v233 = vmul.f32 %v224, %v228
        %v234 = vmul.f32 %v225, %v228
        %v235 = vmul.f32 %v226, %v228
        %v236 = vmul.f32 %v227, %v228
        %v237 = vld [vmem:[#allocation5] sm:$0xff]
        %v238 = vld [vmem:[#allocation5 + $0x8] sm:$0xff]
        %v239 = vld [vmem:[#allocation5 + $0x10] sm:$0xff]
        %v240 = vld [vmem:[#allocation5 + $0x18] sm:$0xff]
        %v241 = vld [vmem:[#allocation5 + $0x20] sm:$0xff]
        %v242 = vld [vmem:[#allocation5 + $0x28] sm:$0xff]
        %v243 = vld [vmem:[#allocation5 + $0x30] sm:$0xff]
        %v244 = vld [vmem:[#allocation5 + $0x38] sm:$0xff]
        %v245 = vld [vmem:[#allocation5 + $0x40] sm:$0xff]
        %v246 = vld [vmem:[#allocation5 + $0x48] sm:$0xff]
        %v247 = vld [vmem:[#allocation5 + $0x50] sm:$0xff]
        %v248 = vld [vmem:[#allocation5 + $0x58] sm:$0xff]
        %v249 = vld [vmem:[#allocation5 + $0x60] sm:$0xff]
        %v250 = vld [vmem:[#allocation5 + $0x68] sm:$0xff]
        %v251 = vld [vmem:[#allocation5 + $0x70] sm:$0xff]
        %v252 = vld [vmem:[#allocation5 + $0x78] sm:$0xff]
        %v253 = vld [vmem:[#allocation5 + $0x80] sm:$0xff]
        %v254 = vld [vmem:[#allocation5 + $0x88] sm:$0xff]
        %v255 = vld [vmem:[#allocation5 + $0x90] sm:$0xff]
        %v256 = vld [vmem:[#allocation5 + $0x98] sm:$0xff]
        %v257 = vld [vmem:[#allocation5 + $0xa0] sm:$0xff]
        %v258 = vld [vmem:[#allocation5 + $0xa8] sm:$0xff]
        %v259 = vld [vmem:[#allocation5 + $0xb0] sm:$0xff]
        %v260 = vld [vmem:[#allocation5 + $0xb8] sm:$0xff]
        %v261 = vld [vmem:[#allocation5 + $0xc0] sm:$0xff]
        %v262 = vld [vmem:[#allocation5 + $0xc8] sm:$0xff]
        %v263 = vld [vmem:[#allocation5 + $0xd0] sm:$0xff]
        %v264 = vld [vmem:[#allocation5 + $0xd8] sm:$0xff]
        %v265 = vld [vmem:[#allocation5 + $0xe0] sm:$0xff]
        %v266 = vld [vmem:[#allocation5 + $0xe8] sm:$0xff]
        %v267 = vld [vmem:[#allocation5 + $0xf0] sm:$0xff]
        %v268 = vld [vmem:[#allocation5 + $0xf8] sm:$0xff]
        %v269 = vld [vmem:[#allocation5 + $0x100] sm:$0xff]
        %v270 = vld [vmem:[#allocation5 + $0x108] sm:$0xff]
        %v271 = vld [vmem:[#allocation5 + $0x110] sm:$0xff]
        %v272 = vld [vmem:[#allocation5 + $0x118] sm:$0xff]
        %v273 = vld [vmem:[#allocation5 + $0x120] sm:$0xff]
        %v274 = vld [vmem:[#allocation5 + $0x128] sm:$0xff]
        %v275 = vld [vmem:[#allocation5 + $0x130] sm:$0xff]
        %v276 = vld [vmem:[#allocation5 + $0x138] sm:$0xff]
        %v277 = vld [vmem:[#allocation5 + $0x140] sm:$0xff]
        %v278 = vld [vmem:[#allocation5 + $0x148] sm:$0xff]
        %v279 = vld [vmem:[#allocation5 + $0x150] sm:$0xff]
        %v280 = vld [vmem:[#allocation5 + $0x158] sm:$0xff]
        %v281 = vld [vmem:[#allocation5 + $0x160] sm:$0xff]
        %v282 = vld [vmem:[#allocation5 + $0x168] sm:$0xff]
        %v283 = vld [vmem:[#allocation5 + $0x170] sm:$0xff]
        %v284 = vld [vmem:[#allocation5 + $0x178] sm:$0xff]
        %v285 = vld [vmem:[#allocation5 + $0x180] sm:$0xff]
        %v286 = vld [vmem:[#allocation5 + $0x188] sm:$0xff]
        %v287 = vld [vmem:[#allocation5 + $0x190] sm:$0xff]
        %v288 = vld [vmem:[#allocation5 + $0x198] sm:$0xff]
        %v289 = vld [vmem:[#allocation5 + $0x1a0] sm:$0xff]
        %v290 = vld [vmem:[#allocation5 + $0x1a8] sm:$0xff]
        %v291 = vld [vmem:[#allocation5 + $0x1b0] sm:$0xff]
        %v292 = vld [vmem:[#allocation5 + $0x1b8] sm:$0xff]
        %v293 = vld [vmem:[#allocation5 + $0x1c0] sm:$0xff]
        %v294 = vld [vmem:[#allocation5 + $0x1c8] sm:$0xff]
        %v295 = vld [vmem:[#allocation5 + $0x1d0] sm:$0xff]
        %v296 = vld [vmem:[#allocation5 + $0x1d8] sm:$0xff]
        %v297 = vld [vmem:[#allocation5 + $0x1e0] sm:$0xff]
        %v298 = vld [vmem:[#allocation5 + $0x1e8] sm:$0xff]
        %v299 = vld [vmem:[#allocation5 + $0x1f0] sm:$0xff]
        %v300 = vld [vmem:[#allocation5 + $0x1f8] sm:$0xff]
        %v301 = vld [vmem:[#allocation5 + $0x200] sm:$0xff]
        %v302 = vld [vmem:[#allocation5 + $0x208] sm:$0xff]
        %v303 = vld [vmem:[#allocation5 + $0x210] sm:$0xff]
        %v304 = vld [vmem:[#allocation5 + $0x218] sm:$0xff]
        %v305 = vld [vmem:[#allocation5 + $0x220] sm:$0xff]
        %v306 = vld [vmem:[#allocation5 + $0x228] sm:$0xff]
        %v307 = vld [vmem:[#allocation5 + $0x230] sm:$0xff]
        %v308 = vld [vmem:[#allocation5 + $0x238] sm:$0xff]
        %v309 = vld [vmem:[#allocation5 + $0x240] sm:$0xff]
        %v310 = vld [vmem:[#allocation5 + $0x248] sm:$0xff]
        %v311 = vld [vmem:[#allocation5 + $0x250] sm:$0xff]
        %v312 = vld [vmem:[#allocation5 + $0x258] sm:$0xff]
        %v313 = vld [vmem:[#allocation5 + $0x260] sm:$0xff]
        %v314 = vld [vmem:[#allocation5 + $0x268] sm:$0xff]
        %v315 = vld [vmem:[#allocation5 + $0x270] sm:$0xff]
        %v316 = vld [vmem:[#allocation5 + $0x278] sm:$0xff]
        %v317 = vld [vmem:[#allocation5 + $0x280] sm:$0xff]
        %v318 = vld [vmem:[#allocation5 + $0x288] sm:$0xff]
        %v319 = vld [vmem:[#allocation5 + $0x290] sm:$0xff]
        %v320 = vld [vmem:[#allocation5 + $0x298] sm:$0xff]
        %v321 = vld [vmem:[#allocation5 + $0x2a0] sm:$0xff]
        %v322 = vld [vmem:[#allocation5 + $0x2a8] sm:$0xff]
        %v323 = vld [vmem:[#allocation5 + $0x2b0] sm:$0xff]
        %v324 = vld [vmem:[#allocation5 + $0x2b8] sm:$0xff]
        %v325 = vld [vmem:[#allocation5 + $0x2c0] sm:$0xff]
        %v326 = vld [vmem:[#allocation5 + $0x2c8] sm:$0xff]
        %v327 = vld [vmem:[#allocation5 + $0x2d0] sm:$0xff]
        %v328 = vld [vmem:[#allocation5 + $0x2d8] sm:$0xff]
        %v329 = vld [vmem:[#allocation5 + $0x2e0] sm:$0xff]
        %v330 = vld [vmem:[#allocation5 + $0x2e8] sm:$0xff]
        %v331 = vld [vmem:[#allocation5 + $0x2f0] sm:$0xff]
        %v332 = vld [vmem:[#allocation5 + $0x2f8] sm:$0xff]
        %v333 = vld [vmem:[#allocation5 + $0x300] sm:$0xff]
        %v334 = vld [vmem:[#allocation5 + $0x308] sm:$0xff]
        %v335 = vld [vmem:[#allocation5 + $0x310] sm:$0xff]
        %v336 = vld [vmem:[#allocation5 + $0x318] sm:$0xff]
        %v337 = vld [vmem:[#allocation5 + $0x320] sm:$0xff]
        %v338 = vld [vmem:[#allocation5 + $0x328] sm:$0xff]
        %v339 = vld [vmem:[#allocation5 + $0x330] sm:$0xff]
        %v340 = vld [vmem:[#allocation5 + $0x338] sm:$0xff]
        %v341 = vld [vmem:[#allocation5 + $0x340] sm:$0xff]
        %v342 = vld [vmem:[#allocation5 + $0x348] sm:$0xff]
        %v343 = vld [vmem:[#allocation5 + $0x350] sm:$0xff]
        %v344 = vld [vmem:[#allocation5 + $0x358] sm:$0xff]
        %v345 = vld [vmem:[#allocation5 + $0x360] sm:$0xff]
        %v346 = vld [vmem:[#allocation5 + $0x368] sm:$0xff]
        %v347 = vld [vmem:[#allocation5 + $0x370] sm:$0xff]
        %v348 = vld [vmem:[#allocation5 + $0x378] sm:$0xff]
        %v349 = vld [vmem:[#allocation5 + $0x380] sm:$0xff]
        %v350 = vld [vmem:[#allocation5 + $0x388] sm:$0xff]
        %v351 = vld [vmem:[#allocation5 + $0x390] sm:$0xff]
        %v352 = vld [vmem:[#allocation5 + $0x398] sm:$0xff]
        %v353 = vld [vmem:[#allocation5 + $0x3a0] sm:$0xff]
        %v354 = vld [vmem:[#allocation5 + $0x3a8] sm:$0xff]
        %v355 = vld [vmem:[#allocation5 + $0x3b0] sm:$0xff]
        %v356 = vld [vmem:[#allocation5 + $0x3b8] sm:$0xff]
        %v357 = vld [vmem:[#allocation5 + $0x3c0] sm:$0xff]
        %v358 = vld [vmem:[#allocation5 + $0x3c8] sm:$0xff]
        %v359 = vld [vmem:[#allocation5 + $0x3d0] sm:$0xff]
        %v360 = vld [vmem:[#allocation5 + $0x3d8] sm:$0xff]
        %v361 = vld [vmem:[#allocation5 + $0x3e0] sm:$0xff]
        %v362 = vld [vmem:[#allocation5 + $0x3e8] sm:$0xff]
        %v363 = vld [vmem:[#allocation5 + $0x3f0] sm:$0xff]
        %v364 = vld [vmem:[#allocation5 + $0x3f8] sm:$0xff]
        %v365 = vld [vmem:[#allocation5 + $0x400] sm:$0xff]
        %v366 = vld [vmem:[#allocation5 + $0x408] sm:$0xff]
        %v367 = vld [vmem:[#allocation5 + $0x410] sm:$0xff]
        %v368 = vld [vmem:[#allocation5 + $0x418] sm:$0xff]
        %v369 = vld [vmem:[#allocation5 + $0x420] sm:$0xff]
        %v370 = vld [vmem:[#allocation5 + $0x428] sm:$0xff]
        %v371 = vld [vmem:[#allocation5 + $0x430] sm:$0xff]
        %v372 = vld [vmem:[#allocation5 + $0x438] sm:$0xff]
        %v373 = vld [vmem:[#allocation5 + $0x440] sm:$0xff]
        %v374 = vld [vmem:[#allocation5 + $0x448] sm:$0xff]
        %v375 = vld [vmem:[#allocation5 + $0x450] sm:$0xff]
        %v376 = vld [vmem:[#allocation5 + $0x458] sm:$0xff]
        %v377 = vld [vmem:[#allocation5 + $0x460] sm:$0xff]
        %v378 = vld [vmem:[#allocation5 + $0x468] sm:$0xff]
        %v379 = vld [vmem:[#allocation5 + $0x470] sm:$0xff]
        %v380 = vld [vmem:[#allocation5 + $0x478] sm:$0xff]
        %v381 = vld [vmem:[#allocation5 + $0x480] sm:$0xff]
        %v382 = vld [vmem:[#allocation5 + $0x488] sm:$0xff]
        %v383 = vld [vmem:[#allocation5 + $0x490] sm:$0xff]
        %v384 = vld [vmem:[#allocation5 + $0x498] sm:$0xff]
        %v385 = vld [vmem:[#allocation5 + $0x4a0] sm:$0xff]
        %v386 = vld [vmem:[#allocation5 + $0x4a8] sm:$0xff]
        %v387 = vld [vmem:[#allocation5 + $0x4b0] sm:$0xff]
        %v388 = vld [vmem:[#allocation5 + $0x4b8] sm:$0xff]
        %v389 = vld [vmem:[#allocation5 + $0x4c0] sm:$0xff]
        %v390 = vld [vmem:[#allocation5 + $0x4c8] sm:$0xff]
        %v391 = vld [vmem:[#allocation5 + $0x4d0] sm:$0xff]
        %v392 = vld [vmem:[#allocation5 + $0x4d8] sm:$0xff]
        %v393 = vld [vmem:[#allocation5 + $0x4e0] sm:$0xff]
        %v394 = vld [vmem:[#allocation5 + $0x4e8] sm:$0xff]
        %v395 = vld [vmem:[#allocation5 + $0x4f0] sm:$0xff]
        %v396 = vld [vmem:[#allocation5 + $0x4f8] sm:$0xff]
        %v397 = vld [vmem:[#allocation5 + $0x500] sm:$0xff]
        %v398 = vld [vmem:[#allocation5 + $0x508] sm:$0xff]
        %v399 = vld [vmem:[#allocation5 + $0x510] sm:$0xff]
        %v400 = vld [vmem:[#allocation5 + $0x518] sm:$0xff]
        %v401 = vld [vmem:[#allocation5 + $0x520] sm:$0xff]
        %v402 = vld [vmem:[#allocation5 + $0x528] sm:$0xff]
        %v403 = vld [vmem:[#allocation5 + $0x530] sm:$0xff]
        %v404 = vld [vmem:[#allocation5 + $0x538] sm:$0xff]
        %v405 = vld [vmem:[#allocation5 + $0x540] sm:$0xff]
        %v406 = vld [vmem:[#allocation5 + $0x548] sm:$0xff]
        %v407 = vld [vmem:[#allocation5 + $0x550] sm:$0xff]
        %v408 = vld [vmem:[#allocation5 + $0x558] sm:$0xff]
        %v409 = vld [vmem:[#allocation5 + $0x560] sm:$0xff]
        %v410 = vld [vmem:[#allocation5 + $0x568] sm:$0xff]
        %v411 = vld [vmem:[#allocation5 + $0x570] sm:$0xff]
        %v412 = vld [vmem:[#allocation5 + $0x578] sm:$0xff]
        %v413 = vld [vmem:[#allocation5 + $0x580] sm:$0xff]
        %v414 = vld [vmem:[#allocation5 + $0x588] sm:$0xff]
        %v415 = vld [vmem:[#allocation5 + $0x590] sm:$0xff]
        %v416 = vld [vmem:[#allocation5 + $0x598] sm:$0xff]
        %v417 = vld [vmem:[#allocation5 + $0x5a0] sm:$0xff]
        %v418 = vld [vmem:[#allocation5 + $0x5a8] sm:$0xff]
        %v419 = vld [vmem:[#allocation5 + $0x5b0] sm:$0xff]
        %v420 = vld [vmem:[#allocation5 + $0x5b8] sm:$0xff]
        %v421 = vld [vmem:[#allocation5 + $0x5c0] sm:$0xff]
        %v422 = vld [vmem:[#allocation5 + $0x5c8] sm:$0xff]
        %v423 = vld [vmem:[#allocation5 + $0x5d0] sm:$0xff]
        %v424 = vld [vmem:[#allocation5 + $0x5d8] sm:$0xff]
        %v425 = vld [vmem:[#allocation5 + $0x5e0] sm:$0xff]
        %v426 = vld [vmem:[#allocation5 + $0x5e8] sm:$0xff]
        %v427 = vld [vmem:[#allocation5 + $0x5f0] sm:$0xff]
        %v428 = vld [vmem:[#allocation5 + $0x5f8] sm:$0xff]
        %v429 = vld [vmem:[#allocation5 + $0x600] sm:$0xff]
        %v430 = vld [vmem:[#allocation5 + $0x608] sm:$0xff]
        %v431 = vld [vmem:[#allocation5 + $0x610] sm:$0xff]
        %v432 = vld [vmem:[#allocation5 + $0x618] sm:$0xff]
        %v433 = vld [vmem:[#allocation5 + $0x620] sm:$0xff]
        %v434 = vld [vmem:[#allocation5 + $0x628] sm:$0xff]
        %v435 = vld [vmem:[#allocation5 + $0x630] sm:$0xff]
        %v436 = vld [vmem:[#allocation5 + $0x638] sm:$0xff]
        %v437 = vld [vmem:[#allocation5 + $0x640] sm:$0xff]
        %v438 = vld [vmem:[#allocation5 + $0x648] sm:$0xff]
        %v439 = vld [vmem:[#allocation5 + $0x650] sm:$0xff]
        %v440 = vld [vmem:[#allocation5 + $0x658] sm:$0xff]
        %v441 = vld [vmem:[#allocation5 + $0x660] sm:$0xff]
        %v442 = vld [vmem:[#allocation5 + $0x668] sm:$0xff]
        %v443 = vld [vmem:[#allocation5 + $0x670] sm:$0xff]
        %v444 = vld [vmem:[#allocation5 + $0x678] sm:$0xff]
        %v445 = vld [vmem:[#allocation5 + $0x680] sm:$0xff]
        %v446 = vld [vmem:[#allocation5 + $0x688] sm:$0xff]
        %v447 = vld [vmem:[#allocation5 + $0x690] sm:$0xff]
        %v448 = vld [vmem:[#allocation5 + $0x698] sm:$0xff]
        %v449 = vld [vmem:[#allocation5 + $0x6a0] sm:$0xff]
        %v450 = vld [vmem:[#allocation5 + $0x6a8] sm:$0xff]
        %v451 = vld [vmem:[#allocation5 + $0x6b0] sm:$0xff]
        %v452 = vld [vmem:[#allocation5 + $0x6b8] sm:$0xff]
        %v453 = vld [vmem:[#allocation5 + $0x6c0] sm:$0xff]
        %v454 = vld [vmem:[#allocation5 + $0x6c8] sm:$0xff]
        %v455 = vld [vmem:[#allocation5 + $0x6d0] sm:$0xff]
        %v456 = vld [vmem:[#allocation5 + $0x6d8] sm:$0xff]
        %v457 = vld [vmem:[#allocation5 + $0x6e0] sm:$0xff]
        %v458 = vld [vmem:[#allocation5 + $0x6e8] sm:$0xff]
        %v459 = vld [vmem:[#allocation5 + $0x6f0] sm:$0xff]
        %v460 = vld [vmem:[#allocation5 + $0x6f8] sm:$0xff]
        %v461 = vld [vmem:[#allocation5 + $0x700] sm:$0xff]
        %v462 = vld [vmem:[#allocation5 + $0x708] sm:$0xff]
        %v463 = vld [vmem:[#allocation5 + $0x710] sm:$0xff]
        %v464 = vld [vmem:[#allocation5 + $0x718] sm:$0xff]
        %v465 = vld [vmem:[#allocation5 + $0x720] sm:$0xff]
        %v466 = vld [vmem:[#allocation5 + $0x728] sm:$0xff]
        %v467 = vld [vmem:[#allocation5 + $0x730] sm:$0xff]
        %v468 = vld [vmem:[#allocation5 + $0x738] sm:$0xff]
        %v469 = vld [vmem:[#allocation5 + $0x740] sm:$0xff]
        %v470 = vld [vmem:[#allocation5 + $0x748] sm:$0xff]
        %v471 = vld [vmem:[#allocation5 + $0x750] sm:$0xff]
        %v472 = vld [vmem:[#allocation5 + $0x758] sm:$0xff]
        %v473 = vld [vmem:[#allocation5 + $0x760] sm:$0xff]
        %v474 = vld [vmem:[#allocation5 + $0x768] sm:$0xff]
        %v475 = vld [vmem:[#allocation5 + $0x770] sm:$0xff]
        %v476 = vld [vmem:[#allocation5 + $0x778] sm:$0xff]
        %v477 = vld [vmem:[#allocation5 + $0x780] sm:$0xff]
        %v478 = vld [vmem:[#allocation5 + $0x788] sm:$0xff]
        %v479 = vld [vmem:[#allocation5 + $0x790] sm:$0xff]
        %v480 = vld [vmem:[#allocation5 + $0x798] sm:$0xff]
        %v481 = vld [vmem:[#allocation5 + $0x7a0] sm:$0xff]
        %v482 = vld [vmem:[#allocation5 + $0x7a8] sm:$0xff]
        %v483 = vld [vmem:[#allocation5 + $0x7b0] sm:$0xff]
        %v484 = vld [vmem:[#allocation5 + $0x7b8] sm:$0xff]
        %v485 = vld [vmem:[#allocation5 + $0x7c0] sm:$0xff]
        %v486 = vld [vmem:[#allocation5 + $0x7c8] sm:$0xff]
        %v487 = vld [vmem:[#allocation5 + $0x7d0] sm:$0xff]
        %v488 = vld [vmem:[#allocation5 + $0x7d8] sm:$0xff]
        %v489 = vld [vmem:[#allocation5 + $0x7e0] sm:$0xff]
        %v490 = vld [vmem:[#allocation5 + $0x7e8] sm:$0xff]
        %v491 = vld [vmem:[#allocation5 + $0x7f0] sm:$0xff]
        %v492 = vld [vmem:[#allocation5 + $0x7f8] sm:$0xff]
        %v493 = vld [vmem:[%s2] sm:$0xf]
        %v495 = vlaneseq
        %v496 = vshrl.u32 %v495, 7
        %v497 = vsub.s32 0, %v496
        %v498 = vrot.slane %v493, %v497
        %v499 = vlaneseq
        %v500 = vshrl.u32 %v499, 7
        %v501 = vsub.s32 1, %v500
        %v502 = vrot.slane %v493, %v501
        %v503 = vlaneseq
        %v504 = vshrl.u32 %v503, 7
        %v505 = vsub.s32 2, %v504
        %v506 = vrot.slane %v493, %v505
        %v507 = vlaneseq
        %v508 = vshrl.u32 %v507, 7
        %v509 = vsub.s32 3, %v508
        %v510 = vrot.slane %v493, %v509
        %515 = vmatprep.subr.mxu0 %v238
        %516 = vmatpush1.msra.mxu0 %v237
        %517 = vmatprep.subr.mxu0 %v242
        %518 = vmatpush1.msra.mxu0 %v241
        %519 = vmatprep.subr.mxu0 %v246
        %520 = vmatpush1.msra.mxu0 %v245
        %521 = vmatprep.subr.mxu0 %v250
        %522 = vmatpush1.msra.mxu0 %v249
        %523 = vmatprep.subr.mxu0 %v254
        %524 = vmatpush1.msra.mxu0 %v253
        %525 = vmatprep.subr.mxu0 %v258
        %526 = vmatpush1.msra.mxu0 %v257
        %527 = vmatprep.subr.mxu0 %v262
        %528 = vmatpush1.msra.mxu0 %v261
        %529 = vmatprep.subr.mxu0 %v266
        %530 = vmatpush1.msra.mxu0 %v265
        %531 = vmatprep.subr.mxu0 %v270
        %532 = vmatpush1.msra.mxu0 %v269
        %533 = vmatprep.subr.mxu0 %v274
        %534 = vmatpush1.msra.mxu0 %v273
        %535 = vmatprep.subr.mxu0 %v278
        %536 = vmatpush1.msra.mxu0 %v277
        %537 = vmatprep.subr.mxu0 %v282
        %538 = vmatpush1.msra.mxu0 %v281
        %539 = vmatprep.subr.mxu0 %v286
        %540 = vmatpush1.msra.mxu0 %v285
        %541 = vmatprep.subr.mxu0 %v290
        %542 = vmatpush1.msra.mxu0 %v289
        %543 = vmatprep.subr.mxu0 %v294
        %544 = vmatpush1.msra.mxu0 %v293
        %545 = vmatprep.subr.mxu0 %v298
        %546 = vmatpush1.msra.mxu0 %v297
        %547 = vmatprep.subr.mxu0 %v302
        %548 = vmatpush1.msra.mxu0 %v301
        %549 = vmatprep.subr.mxu0 %v306
        %550 = vmatpush1.msra.mxu0 %v305
        %551 = vmatprep.subr.mxu0 %v310
        %552 = vmatpush1.msra.mxu0 %v309
        %553 = vmatprep.subr.mxu0 %v314
        %554 = vmatpush1.msra.mxu0 %v313
        %555 = vmatprep.subr.mxu0 %v318
        %556 = vmatpush1.msra.mxu0 %v317
        %557 = vmatprep.subr.mxu0 %v322
        %558 = vmatpush1.msra.mxu0 %v321
        %559 = vmatprep.subr.mxu0 %v326
        %560 = vmatpush1.msra.mxu0 %v325
        %561 = vmatprep.subr.mxu0 %v330
        %562 = vmatpush1.msra.mxu0 %v329
        %563 = vmatprep.subr.mxu0 %v334
        %564 = vmatpush1.msra.mxu0 %v333
        %565 = vmatprep.subr.mxu0 %v338
        %566 = vmatpush1.msra.mxu0 %v337
        %567 = vmatprep.subr.mxu0 %v342
        %568 = vmatpush1.msra.mxu0 %v341
        %569 = vmatprep.subr.mxu0 %v346
        %570 = vmatpush1.msra.mxu0 %v345
        %571 = vmatprep.subr.mxu0 %v350
        %572 = vmatpush1.msra.mxu0 %v349
        %573 = vmatprep.subr.mxu0 %v354
        %574 = vmatpush1.msra.mxu0 %v353
        %575 = vmatprep.subr.mxu0 %v358
        %576 = vmatpush1.msra.mxu0 %v357
        %577 = vmatprep.subr.mxu0 %v362
        %578 = vmatpush1.msra.mxu0 %v361
        %579 = vmatprep.mubr.f32.mxu0 %v230
        %580 = vmatmul.mubr.f32.gmra.mrb[0].mxu0 %v229
        %v581 = vpop.f32.mrb[0].mxu0
        %v582 = vadd.f32 %v498, %v581
        %v583 = vpop.f32.mrb[0].mxu0
        %v584 = vadd.f32 %v502, %v583
        %585 = vmatprep.mubr.f32.mxu0 %v234
        %586 = vmatmul.mubr.f32.gmra.mrb[0].mxu0 %v233
        %v587 = vpop.f32.mrb[0].mxu0
        %v588 = vadd.f32 %v498, %v587
        %v589 = vpop.f32.mrb[0].mxu0
        %v590 = vadd.f32 %v502, %v589
        %591 = vdwg.mxu0
        %592 = vmatprep.subr.mxu0 %v366
        %593 = vmatpush1.msra.mxu0 %v365
        %594 = vmatprep.subr.mxu0 %v370
        %595 = vmatpush1.msra.mxu0 %v369
        %596 = vmatprep.subr.mxu0 %v374
        %597 = vmatpush1.msra.mxu0 %v373
        %598 = vmatprep.subr.mxu0 %v378
        %599 = vmatpush1.msra.mxu0 %v377
        %600 = vmatprep.subr.mxu0 %v382
        %601 = vmatpush1.msra.mxu0 %v381
        %602 = vmatprep.subr.mxu0 %v386
        %603 = vmatpush1.msra.mxu0 %v385
        %604 = vmatprep.subr.mxu0 %v390
        %605 = vmatpush1.msra.mxu0 %v389
        %606 = vmatprep.subr.mxu0 %v394
        %607 = vmatpush1.msra.mxu0 %v393
        %608 = vmatprep.subr.mxu0 %v398
        %609 = vmatpush1.msra.mxu0 %v397
        %610 = vmatprep.subr.mxu0 %v402
        %611 = vmatpush1.msra.mxu0 %v401
        %612 = vmatprep.subr.mxu0 %v406
        %613 = vmatpush1.msra.mxu0 %v405
        %614 = vmatprep.subr.mxu0 %v410
        %615 = vmatpush1.msra.mxu0 %v409
        %616 = vmatprep.subr.mxu0 %v414
        %617 = vmatpush1.msra.mxu0 %v413
        %618 = vmatprep.subr.mxu0 %v418
        %619 = vmatpush1.msra.mxu0 %v417
        %620 = vmatprep.subr.mxu0 %v422
        %621 = vmatpush1.msra.mxu0 %v421
        %622 = vmatprep.subr.mxu0 %v426
        %623 = vmatpush1.msra.mxu0 %v425
        %624 = vmatprep.subr.mxu0 %v430
        %625 = vmatpush1.msra.mxu0 %v429
        %626 = vmatprep.subr.mxu0 %v434
        %627 = vmatpush1.msra.mxu0 %v433
        %628 = vmatprep.subr.mxu0 %v438
        %629 = vmatpush1.msra.mxu0 %v437
        %630 = vmatprep.subr.mxu0 %v442
        %631 = vmatpush1.msra.mxu0 %v441
        %632 = vmatprep.subr.mxu0 %v446
        %633 = vmatpush1.msra.mxu0 %v445
        %634 = vmatprep.subr.mxu0 %v450
        %635 = vmatpush1.msra.mxu0 %v449
        %636 = vmatprep.subr.mxu0 %v454
        %637 = vmatpush1.msra.mxu0 %v453
        %638 = vmatprep.subr.mxu0 %v458
        %639 = vmatpush1.msra.mxu0 %v457
        %640 = vmatprep.subr.mxu0 %v462
        %641 = vmatpush1.msra.mxu0 %v461
        %642 = vmatprep.subr.mxu0 %v466
        %643 = vmatpush1.msra.mxu0 %v465
        %644 = vmatprep.subr.mxu0 %v470
        %645 = vmatpush1.msra.mxu0 %v469
        %646 = vmatprep.subr.mxu0 %v474
        %647 = vmatpush1.msra.mxu0 %v473
        %648 = vmatprep.subr.mxu0 %v478
        %649 = vmatpush1.msra.mxu0 %v477
        %650 = vmatprep.subr.mxu0 %v482
        %651 = vmatpush1.msra.mxu0 %v481
        %652 = vmatprep.subr.mxu0 %v486
        %653 = vmatpush1.msra.mxu0 %v485
        %654 = vmatprep.subr.mxu0 %v490
        %655 = vmatpush1.msra.mxu0 %v489
        %656 = vmatprep.mubr.f32.mxu0 %v232
        %657 = vmatmul.mubr.f32.gmra.mrb[0].mxu0 %v231
        %v658 = vpop.f32.mrb[0].mxu0
        %v659 = vadd.f32 %v582, %v658
        %v660 = vpop.f32.mrb[0].mxu0
        %v661 = vadd.f32 %v584, %v660
        %662 = vmatprep.mubr.f32.mxu0 %v236
        %663 = vmatmul.mubr.f32.gmra.mrb[0].mxu0 %v235
        %v664 = vpop.f32.mrb[0].mxu0
        %v665 = vadd.f32 %v588, %v664
        %v666 = vpop.f32.mrb[0].mxu0
        %v667 = vadd.f32 %v590, %v666
        %668 = vdwg.mxu0
        %669 = vmatprep.subr.mxu0 %v240
        %670 = vmatpush1.msra.mxu0 %v239
        %671 = vmatprep.subr.mxu0 %v244
        %672 = vmatpush1.msra.mxu0 %v243
        %673 = vmatprep.subr.mxu0 %v248
        %674 = vmatpush1.msra.mxu0 %v247
        %675 = vmatprep.subr.mxu0 %v252
        %676 = vmatpush1.msra.mxu0 %v251
        %677 = vmatprep.subr.mxu0 %v256
        %678 = vmatpush1.msra.mxu0 %v255
        %679 = vmatprep.subr.mxu0 %v260
        %680 = vmatpush1.msra.mxu0 %v259
        %681 = vmatprep.subr.mxu0 %v264
        %682 = vmatpush1.msra.mxu0 %v263
        %683 = vmatprep.subr.mxu0 %v268
        %684 = vmatpush1.msra.mxu0 %v267
        %685 = vmatprep.subr.mxu0 %v272
        %686 = vmatpush1.msra.mxu0 %v271
        %687 = vmatprep.subr.mxu0 %v276
        %688 = vmatpush1.msra.mxu0 %v275
        %689 = vmatprep.subr.mxu0 %v280
        %690 = vmatpush1.msra.mxu0 %v279
        %691 = vmatprep.subr.mxu0 %v284
        %692 = vmatpush1.msra.mxu0 %v283
        %693 = vmatprep.subr.mxu0 %v288
        %694 = vmatpush1.msra.mxu0 %v287
        %695 = vmatprep.subr.mxu0 %v292
        %696 = vmatpush1.msra.mxu0 %v291
        %697 = vmatprep.subr.mxu0 %v296
        %698 = vmatpush1.msra.mxu0 %v295
        %699 = vmatprep.subr.mxu0 %v300
        %700 = vmatpush1.msra.mxu0 %v299
        %701 = vmatprep.subr.mxu0 %v304
        %702 = vmatpush1.msra.mxu0 %v303
        %703 = vmatprep.subr.mxu0 %v308
        %704 = vmatpush1.msra.mxu0 %v307
        %705 = vmatprep.subr.mxu0 %v312
        %706 = vmatpush1.msra.mxu0 %v311
        %707 = vmatprep.subr.mxu0 %v316
        %708 = vmatpush1.msra.mxu0 %v315
        %709 = vmatprep.subr.mxu0 %v320
        %710 = vmatpush1.msra.mxu0 %v319
        %711 = vmatprep.subr.mxu0 %v324
        %712 = vmatpush1.msra.mxu0 %v323
        %713 = vmatprep.subr.mxu0 %v328
        %714 = vmatpush1.msra.mxu0 %v327
        %715 = vmatprep.subr.mxu0 %v332
        %716 = vmatpush1.msra.mxu0 %v331
        %717 = vmatprep.subr.mxu0 %v336
        %718 = vmatpush1.msra.mxu0 %v335
        %719 = vmatprep.subr.mxu0 %v340
        %720 = vmatpush1.msra.mxu0 %v339
        %721 = vmatprep.subr.mxu0 %v344
        %722 = vmatpush1.msra.mxu0 %v343
        %723 = vmatprep.subr.mxu0 %v348
        %724 = vmatpush1.msra.mxu0 %v347
        %725 = vmatprep.subr.mxu0 %v352
        %726 = vmatpush1.msra.mxu0 %v351
        %727 = vmatprep.subr.mxu0 %v356
        %728 = vmatpush1.msra.mxu0 %v355
        %729 = vmatprep.subr.mxu0 %v360
        %730 = vmatpush1.msra.mxu0 %v359
        %731 = vmatprep.subr.mxu0 %v364
        %732 = vmatpush1.msra.mxu0 %v363
        %733 = vmatprep.mubr.f32.mxu0 %v230
        %734 = vmatmul.mubr.f32.gmra.mrb[0].mxu0 %v229
        %v735 = vpop.f32.mrb[0].mxu0
        %v736 = vadd.f32 %v506, %v735
        %v737 = vpop.f32.mrb[0].mxu0
        %v738 = vadd.f32 %v510, %v737
        %739 = vmatprep.mubr.f32.mxu0 %v234
        %740 = vmatmul.mubr.f32.gmra.mrb[0].mxu0 %v233
        %v741 = vpop.f32.mrb[0].mxu0
        %v742 = vadd.f32 %v506, %v741
        %v743 = vpop.f32.mrb[0].mxu0
        %v744 = vadd.f32 %v510, %v743
        %745 = vdwg.mxu0
        %746 = vmatprep.subr.mxu0 %v368
        %747 = vmatpush1.msra.mxu0 %v367
        %748 = vmatprep.subr.mxu0 %v372
        %749 = vmatpush1.msra.mxu0 %v371
        %750 = vmatprep.subr.mxu0 %v376
        %751 = vmatpush1.msra.mxu0 %v375
        %752 = vmatprep.subr.mxu0 %v380
        %753 = vmatpush1.msra.mxu0 %v379
        %754 = vmatprep.subr.mxu0 %v384
        %755 = vmatpush1.msra.mxu0 %v383
        %756 = vmatprep.subr.mxu0 %v388
        %757 = vmatpush1.msra.mxu0 %v387
        %758 = vmatprep.subr.mxu0 %v392
        %759 = vmatpush1.msra.mxu0 %v391
        %760 = vmatprep.subr.mxu0 %v396
        %761 = vmatpush1.msra.mxu0 %v395
        %762 = vmatprep.subr.mxu0 %v400
        %763 = vmatpush1.msra.mxu0 %v399
        %764 = vmatprep.subr.mxu0 %v404
        %765 = vmatpush1.msra.mxu0 %v403
        %766 = vmatprep.subr.mxu0 %v408
        %767 = vmatpush1.msra.mxu0 %v407
        %768 = vmatprep.subr.mxu0 %v412
        %769 = vmatpush1.msra.mxu0 %v411
        %770 = vmatprep.subr.mxu0 %v416
        %771 = vmatpush1.msra.mxu0 %v415
        %772 = vmatprep.subr.mxu0 %v420
        %773 = vmatpush1.msra.mxu0 %v419
        %774 = vmatprep.subr.mxu0 %v424
        %775 = vmatpush1.msra.mxu0 %v423
        %776 = vmatprep.subr.mxu0 %v428
        %777 = vmatpush1.msra.mxu0 %v427
        %778 = vmatprep.subr.mxu0 %v432
        %779 = vmatpush1.msra.mxu0 %v431
        %780 = vmatprep.subr.mxu0 %v436
        %781 = vmatpush1.msra.mxu0 %v435
        %782 = vmatprep.subr.mxu0 %v440
        %783 = vmatpush1.msra.mxu0 %v439
        %784 = vmatprep.subr.mxu0 %v444
        %785 = vmatpush1.msra.mxu0 %v443
        %786 = vmatprep.subr.mxu0 %v448
        %787 = vmatpush1.msra.mxu0 %v447
        %788 = vmatprep.subr.mxu0 %v452
        %789 = vmatpush1.msra.mxu0 %v451
        %790 = vmatprep.subr.mxu0 %v456
        %791 = vmatpush1.msra.mxu0 %v455
        %792 = vmatprep.subr.mxu0 %v460
        %793 = vmatpush1.msra.mxu0 %v459
        %794 = vmatprep.subr.mxu0 %v464
        %795 = vmatpush1.msra.mxu0 %v463
        %796 = vmatprep.subr.mxu0 %v468
        %797 = vmatpush1.msra.mxu0 %v467
        %798 = vmatprep.subr.mxu0 %v472
        %799 = vmatpush1.msra.mxu0 %v471
        %800 = vmatprep.subr.mxu0 %v476
        %801 = vmatpush1.msra.mxu0 %v475
        %802 = vmatprep.subr.mxu0 %v480
        %803 = vmatpush1.msra.mxu0 %v479
        %804 = vmatprep.subr.mxu0 %v484
        %805 = vmatpush1.msra.mxu0 %v483
        %806 = vmatprep.subr.mxu0 %v488
        %807 = vmatpush1.msra.mxu0 %v487
        %808 = vmatprep.subr.mxu0 %v492
        %809 = vmatpush1.msra.mxu0 %v491
        %810 = vmatprep.mubr.f32.mxu0 %v232
        %811 = vmatmul.mubr.f32.gmra.mrb[0].mxu0 %v231
        %v812 = vpop.f32.mrb[0].mxu0
        %v813 = vadd.f32 %v736, %v812
        %v814 = vpop.f32.mrb[0].mxu0
        %v815 = vadd.f32 %v738, %v814
        %816 = vmatprep.mubr.f32.mxu0 %v236
        %817 = vmatmul.mubr.f32.gmra.mrb[0].mxu0 %v235
        %v818 = vpop.f32.mrb[0].mxu0
        %v819 = vadd.f32 %v742, %v818
        %v820 = vpop.f32.mrb[0].mxu0
        %v821 = vadd.f32 %v744, %v820
        %822 = vdwg.mxu0
        %823 = vst [vmem:[%s203] sm:$0xff] %v659
        %824 = vst [vmem:[%s203 + $0x8] sm:$0xff] %v661
        %825 = vst [vmem:[%s203 + $0x10] sm:$0xff] %v813
        %826 = vst [vmem:[%s203 + $0x18] sm:$0xff] %v815
        %827 = vst [vmem:[%s203 + $0x20] sm:$0xff] %v665
        %828 = vst [vmem:[%s203 + $0x28] sm:$0xff] %v667
        %829 = vst [vmem:[%s203 + $0x30] sm:$0xff] %v819
        %830 = vst [vmem:[%s203 + $0x38] sm:$0xff] %v821
        %s831 = sand.u32 %s97, 1
        %s832 = scalar_lea.sflag [#allocation4], %s831
        %s833 = sand.u32 %s97, 1
        %s834 = smul.addr %s833, 64
        %s835 = scalar_lea.vmem [#allocation7], %s834
        // Predicated region
        $region41: #{tpu_custom_call.1} parent=31 // pred_check
          %p836 = pneg %p107
        $region42: #{tpu_custom_call.1} parent=31 // pred_check_branch
          %838 = sbr.rel (%p836) target = $region44
        $region43: #{tpu_custom_call.1} parent=31 // pred_region
          %s840 = ssub.s32 1024, 1024
          %841 = vsyncadd %s832, %s840
          %s842 = smul.addr %s21, 8
          %s843 = smul.addr %s842, 128
          %s844 = scalar_lea.hbm %s3, %s843
          %s845 = sshll.u32 %s835, 4
          %s846 = int_to_ptr.vmem [resolvable:$true] %s845
          %851 = dma.vmem_to_hbm [thread:$0]  %s846, 1024, %s844, %s832, 512, 512, 32
        $region44: #{tpu_custom_call.1} parent=31 // pred_fallthru
          _
      $region32: #{tpu_custom_call.1} parent=5 // pred_fallthru
        _
      %p852 = scmp.le.s32.totalorder 2, %s16
      // Predicated region
      $region45: #{tpu_custom_call.1} parent=5 // pred_check
        %p853 = pneg %p852
      $region46: #{tpu_custom_call.1} parent=5 // pred_check_branch
        %855 = sbr.rel (%p853) target = $region48
      $region47: #{tpu_custom_call.1} parent=5 // pred_region
        %s856 = ssub.s32 %s16, 2
        // Predicated region
        $region49: #{tpu_custom_call.1} parent=47 // pred_check
          %p857 = pneg %p113
        $region50: #{tpu_custom_call.1} parent=47 // pred_check_branch
          %859 = sbr.rel (%p857) target = $region52
        $region51: #{tpu_custom_call.1} parent=47 // pred_region
          %s860 = sand.u32 %s98, 1
          %s861 = scalar_lea.sflag [#allocation4], %s860
          %s862 = sand.u32 %s98, 1
          %s863 = smul.addr %s862, 64
          %s864 = scalar_lea.vmem [#allocation7], %s863
          %865 = dma.done %s861, 1024
        $region52: #{tpu_custom_call.1} parent=47 // pred_fallthru
          _
      $region48: #{tpu_custom_call.1} parent=5 // pred_fallthru
        _
    $region6: #{tpu_custom_call.1} parent=1 // loop_footer
      %s20 = sadd.s32 1, %s16
    $region7: #{tpu_custom_call.1} parent=1 // loop_footer_branch
      %15 = sbr.rel target = $region3
    $region8: #{tpu_custom_call.1} parent=1 // loop_exit
      _
    %866 = vsyncpa [#allocation3], 1
    %s867 = scalar_lea.sflag [#allocation3], 1
    %868 = vsyncpa %s867, 1
    %869 = vsyncpa [#allocation6], 1
    %870 = vsyncpa [#allocation4], 1
    %s871 = scalar_lea.sflag [#allocation4], 1
    %872 = vsyncpa %s871, 1

</llo_original>
